<compile_context>
chip_gen: v5e
topology: v5e:2x2
jax: 0.10.0
libtpu: 0.0.40
codegen_flags: <defaults>
</compile_context>

<pallas_src>
import functools

import jax
import jax.numpy as jnp
from jax import lax
from jax.experimental import pallas as pl
from jax.experimental.pallas import tpu as pltpu

EPS = 1e-5  # torch.nn.LayerNorm default


def _layernorm(x, gamma, beta):
    """LayerNorm over the last axis; gamma/beta are (1, C); math stays in f32."""
    mu = jnp.mean(x, axis=-1, keepdims=True)
    xc = x - mu
    var = jnp.mean(xc * xc, axis=-1, keepdims=True)
    return xc * lax.rsqrt(var + EPS) * gamma + beta


def block_kernel(x_ref,
                 ln1_g_ref, ln1_b_ref,
                 wqkv_ref,
                 wproj_ref, bproj_ref,
                 ln2_g_ref, ln2_b_ref,
                 w1_ref, b1_ref,
                 lnf_g_ref, lnf_b_ref,
                 w2_ref, b2_ref,
                 o_ref,
                 *, n_head):
    Bblk, T, C = x_ref.shape
    hs = C // n_head
    mm_dtype = wqkv_ref.dtype        # bf16 for native MXU throughput, or f32

    x = x_ref[...].reshape(Bblk * T, C)          # all batch rows of this grid step

    # ---------------- self-attention branch: x + proj(mha(ln1(x))) -----------------
    xn = _layernorm(x, ln1_g_ref[...], ln1_b_ref[...])
    # Fused QKV projection: one MXU pass with a 3C-wide output instead of three.
    qkv = jnp.dot(xn.astype(mm_dtype), wqkv_ref[...],
                  preferred_element_type=jnp.float32)            # (rows, 3C)
    # NOTE: the reference intentionally scales by n_embd**-0.5 (not head_size**-0.5).
    # Fold the scale into q once instead of scaling every (T, T) score matrix.
    q = qkv[:, 0 * C:1 * C] * (C ** -0.5)
    k = qkv[:, 1 * C:2 * C]
    v = qkv[:, 2 * C:3 * C]

    def to_heads(a2d):
        # (Bblk*T, C) -> (n_head*Bblk, T, hs): gather heads once, then run
        # batched MXU/softmax ops instead of a per-head Python loop.
        return jnp.concatenate(
            [a2d[:, h * hs:(h + 1) * hs].reshape(Bblk, T, hs)
             for h in range(n_head)],
            axis=0)

    qh = to_heads(q).astype(mm_dtype)            # (HB, T, hs), HB = n_head*Bblk
    kh = to_heads(k).astype(mm_dtype)
    vh = to_heads(v).astype(mm_dtype)

    # Batched scores over all (head, batch) pairs: one MXU call.
    s = jnp.einsum('bqd,bkd->bqk', qh, kh,
                   preferred_element_type=jnp.float32)           # (HB, T, T)

    # Causal mask computed once and broadcast over the head/batch dim.
    row = lax.broadcasted_iota(jnp.int32, (T, T), 0)
    col = lax.broadcasted_iota(jnp.int32, (T, T), 1)
    causal = (col <= row)[None, :, :]
    # -inf masking is safe for the causal case (every row has >=1 unmasked entry).
    s = jnp.where(causal, s, -jnp.inf)
    s = s - jnp.max(s, axis=-1, keepdims=True)
    p = jnp.exp(s)
    # reciprocal goes to the EUP slot instead of a VALU divide sequence
    p = p * pl.reciprocal(jnp.sum(p, axis=-1, keepdims=True), approx=True)

    av = jnp.einsum('bqk,bkd->bqd', p.astype(mm_dtype), vh,
                    preferred_element_type=jnp.float32)          # (HB, T, hs)
    # Reassemble heads along the channel dim (head-major, matching torch.cat).
    attn = jnp.concatenate(
        [av[h * Bblk:(h + 1) * Bblk].reshape(Bblk * T, hs) for h in range(n_head)],
        axis=-1)                                                 # (rows, C)
    # attention dropout / output dropout -> identity in eval mode
    attn = jnp.dot(attn.astype(mm_dtype), wproj_ref[...],
                   preferred_element_type=jnp.float32) + bproj_ref[...]
    x1 = x + attn

    # ---------------- feed-forward branch: x1 + Lin(ReLU(LN(Lin(ln2(x1))))) --------
    xn2 = _layernorm(x1, ln2_g_ref[...], ln2_b_ref[...])
    h1 = jnp.dot(xn2.astype(mm_dtype), w1_ref[...],
                 preferred_element_type=jnp.float32) + b1_ref[...]     # (rows, 4C)
    h1 = jnp.maximum(_layernorm(h1, lnf_g_ref[...], lnf_b_ref[...]), 0.0)
    ff = jnp.dot(h1.astype(mm_dtype), w2_ref[...],
                 preferred_element_type=jnp.float32) + b2_ref[...]     # (rows, C)

    o_ref[...] = (x1 + ff).reshape(Bblk, T, C).astype(o_ref.dtype)


def transformer_block(x, params, n_head, *, batch_block=None,
                      matmul_dtype=jnp.float32):
    """Forward pass of Block as one Pallas kernel.

    params: (ln1_g, ln1_b, wq, wk, wv, wproj, bproj, ln2_g, ln2_b,
             w1, b1, lnf_g, lnf_b, w2, b2), linear weights stored (in, out).
    batch_block: batch rows per grid step (default: whole batch per step; use
      1 on v7x if you want the two TensorCores to each take a batch element).
    matmul_dtype: jnp.bfloat16 casts GEMM operands to bf16 (f32 accumulation);
      LayerNorm / softmax / residuals remain in f32.
    """
    (ln1_g, ln1_b, wq, wk, wv, wproj, bproj,
     ln2_g, ln2_b, w1, b1, lnf_g, lnf_b, w2, b2) = params
    B, T, C = x.shape
    H = 4 * C
    Bblk = B if batch_block is None else max(1, min(batch_block, B))
    assert B % Bblk == 0, "batch_block must divide the batch size"
    assert C % n_head == 0

    # Fuse Q/K/V into one (C, 3C) weight; pre-cast GEMM weights to matmul_dtype
    # (halves weight DMA/VMEM bytes in bf16). Biases / LN params stay f32.
    wqkv = jnp.concatenate([wq, wk, wv], axis=1).astype(matmul_dtype)
    wproj_m = wproj.astype(matmul_dtype)
    w1_m = w1.astype(matmul_dtype)
    w2_m = w2.astype(matmul_dtype)

    def vec_spec(n):
        return pl.BlockSpec((1, n), lambda b: (0, 0))

    def mat_spec(m, n):
        # Constant index_map: weights are fetched once and stay resident in VMEM.
        return pl.BlockSpec((m, n), lambda b: (0, 0))

    in_specs = [
        pl.BlockSpec((Bblk, T, C), lambda b: (b, 0, 0)),   # x: Bblk rows per step
        vec_spec(C), vec_spec(C),                          # ln1 gamma/beta
        mat_spec(C, 3 * C),                                # fused Wqkv
        mat_spec(C, C), vec_spec(C),                       # proj W, b
        vec_spec(C), vec_spec(C),                          # ln2 gamma/beta
        mat_spec(C, H), vec_spec(H),                       # ffwd W1, b1
        vec_spec(H), vec_spec(H),                          # ffwd inner LayerNorm
        mat_spec(H, C), vec_spec(C),                       # ffwd W2, b2
    ]

    # Advisory cost estimate so XLA schedules surrounding HLO sensibly.
    flops = 2 * B * T * C * (3 * C)          # fused QKV projection
    flops += 4 * B * T * T * C               # scores + p@v over all heads
    flops += 2 * B * T * C * C               # attention output projection
    flops += 4 * B * T * C * H               # two FFN GEMMs
    transcendentals = B * n_head * T * T + B * n_head * T   # exp + reciprocal
    param_bytes = sum(int(a.size) * a.dtype.itemsize for a in
                      (ln1_g, ln1_b, wqkv, wproj_m, bproj, ln2_g, ln2_b,
                       w1_m, b1, lnf_g, lnf_b, w2_m, b2))
    bytes_accessed = 2 * int(x.size) * x.dtype.itemsize + param_bytes

    kernel = functools.partial(block_kernel, n_head=n_head)
    return pl.pallas_call(
        kernel,
        out_shape=jax.ShapeDtypeStruct((B, T, C), jnp.float32),
        grid_spec=pltpu.PrefetchScalarGridSpec(
            num_scalar_prefetch=0,
            grid=(B // Bblk,),
            in_specs=in_specs,
            out_specs=pl.BlockSpec((Bblk, T, C), lambda b: (b, 0, 0)),
        ),
        compiler_params=pltpu.CompilerParams(
            dimension_semantics=("parallel",),
            # Explicit scoped-VMEM ceiling; safe on v5e/v6e (128 MiB) and v7x (64 MiB).
            vmem_limit_bytes=32 * 1024 * 1024,
        ),
        cost_estimate=pl.CostEstimate(
            flops=int(flops),
            transcendentals=int(transcendentals),
            bytes_accessed=int(bytes_accessed)),
    )(x, ln1_g, ln1_b, wqkv, wproj_m, bproj, ln2_g, ln2_b,
      w1_m, b1, lnf_g, lnf_b, w2_m, b2)


def reference_block(x, params, n_head):
    """Pure-JAX reference matching the PyTorch module in eval mode."""
    (ln1_g, ln1_b, wq, wk, wv, wproj, bproj,
     ln2_g, ln2_b, w1, b1, lnf_g, lnf_b, w2, b2) = params
    B, T, C = x.shape
    hs = C // n_head

    def ln(v, g, b):
        mu = jnp.mean(v, axis=-1, keepdims=True)
        var = jnp.mean((v - mu) ** 2, axis=-1, keepdims=True)
        return (v - mu) / jnp.sqrt(var + EPS) * g + b

    xn = ln(x, ln1_g, ln1_b)
    q, k, v = xn @ wq, xn @ wk, xn @ wv
    causal = jnp.tril(jnp.ones((T, T), bool))
    outs = []
    for h in range(n_head):
        qh, kh, vh = (a[..., h * hs:(h + 1) * hs] for a in (q, k, v))
        wei = jnp.einsum('btd,bsd->bts', qh, kh) * C ** (-0.5)
        wei = jnp.where(causal, wei, -jnp.inf)
        wei = jax.nn.softmax(wei, axis=-1)
        outs.append(jnp.einsum('bts,bsd->btd', wei, vh))
    attn = jnp.concatenate(outs, axis=-1) @ wproj + bproj
    x1 = x + attn
    h1 = ln(x1, ln2_g, ln2_b) @ w1 + b1
    h1 = jax.nn.relu(ln(h1, lnf_g, lnf_b))
    return x1 + h1 @ w2 + b2


if __name__ == "__main__":
    B, T, C, n_head = 2, 8, 32, 4   # block_size = T, n_embd = C, head_size = C // n_head
    H = 4 * C

    key = jax.random.PRNGKey(0)
    keys = jax.random.split(key, 16)
    f = lambda k, shape, s: jax.random.normal(k, shape, jnp.float32) * s

    params = (
        1.0 + f(keys[0], (1, C), 0.1), f(keys[1], (1, C), 0.1),          # ln1 gamma/beta
        f(keys[2], (C, C), 0.2), f(keys[3], (C, C), 0.2), f(keys[4], (C, C), 0.2),  # Wq Wk Wv
        f(keys[5], (C, C), 0.2), f(keys[6], (1, C), 0.1),                # proj W, b
        1.0 + f(keys[7], (1, C), 0.1), f(keys[8], (1, C), 0.1),          # ln2 gamma/beta
        f(keys[9], (C, H), 0.2), f(keys[10], (1, H), 0.1),               # ffwd W1, b1
        1.0 + f(keys[11], (1, H), 0.1), f(keys[12], (1, H), 0.1),        # ffwd inner LN
        f(keys[13], (H, C), 0.2), f(keys[14], (1, C), 0.1),              # ffwd W2, b2
    )
    x = jax.random.normal(keys[15], (B, T, C), jnp.float32)

    ref = reference_block(x, params, n_head)

    # f32 GEMM path (tolerance accounts for the EUP approximate reciprocal).
    out = transformer_block(x, params, n_head)
    jax.block_until_ready(out)
    assert out.shape == (B, T, C)
    err = float(jnp.max(jnp.abs(out - ref)))
    assert jnp.allclose(out, ref, atol=1e-2, rtol=1e-2), f"f32 max abs err = {err}"

    # bf16 GEMM-operand path (recommended on v6e/v7x); looser tolerance vs f32 ref.
    out_bf16 = transformer_block(x, params, n_head, matmul_dtype=jnp.bfloat16)
    jax.block_until_ready(out_bf16)
    err_bf16 = float(jnp.max(jnp.abs(out_bf16 - ref)))
    assert jnp.allclose(out_bf16, ref, atol=3e-1, rtol=1e-1), \
        f"bf16 max abs err = {err_bf16}"

    print("KERNEL_OK")
</pallas_src>

<mosaic_0001>
module attributes {stable_mosaic.version = 11 : i64} {
  func.func @block_kernel(%arg0: i32, %arg1: memref<2x8x32xf32, #tpu.memory_space<vmem>>, %arg2: memref<1x32xf32, #tpu.memory_space<vmem>>, %arg3: memref<1x32xf32, #tpu.memory_space<vmem>>, %arg4: memref<32x96xf32, #tpu.memory_space<vmem>>, %arg5: memref<32x32xf32, #tpu.memory_space<vmem>>, %arg6: memref<1x32xf32, #tpu.memory_space<vmem>>, %arg7: memref<1x32xf32, #tpu.memory_space<vmem>>, %arg8: memref<1x32xf32, #tpu.memory_space<vmem>>, %arg9: memref<32x128xf32, #tpu.memory_space<vmem>>, %arg10: memref<1x128xf32, #tpu.memory_space<vmem>>, %arg11: memref<1x128xf32, #tpu.memory_space<vmem>>, %arg12: memref<1x128xf32, #tpu.memory_space<vmem>>, %arg13: memref<128x32xf32, #tpu.memory_space<vmem>>, %arg14: memref<1x32xf32, #tpu.memory_space<vmem>>, %arg15: memref<2x8x32xf32, #tpu.memory_space<vmem>>) attributes {dimension_semantics = [#tpu.dimension_semantics<parallel>], iteration_bounds = array<i64: 1>, scalar_prefetch = 0 : i64, scratch_operands = 0 : i64, tpu.core_type = #tpu.core_type<tc>, window_params = [{transform_indices = @transform_0, window_bounds = array<i64: 2, 8, 32>}, {pipeline_mode = #tpu.pipeline_mode<synchronous>, transform_indices = @transform_1, window_bounds = array<i64: 1, 32>}, {pipeline_mode = #tpu.pipeline_mode<synchronous>, transform_indices = @transform_2, window_bounds = array<i64: 1, 32>}, {pipeline_mode = #tpu.pipeline_mode<synchronous>, transform_indices = @transform_3, window_bounds = array<i64: 32, 96>}, {pipeline_mode = #tpu.pipeline_mode<synchronous>, transform_indices = @transform_4, window_bounds = array<i64: 32, 32>}, {pipeline_mode = #tpu.pipeline_mode<synchronous>, transform_indices = @transform_5, window_bounds = array<i64: 1, 32>}, {pipeline_mode = #tpu.pipeline_mode<synchronous>, transform_indices = @transform_6, window_bounds = array<i64: 1, 32>}, {pipeline_mode = #tpu.pipeline_mode<synchronous>, transform_indices = @transform_7, window_bounds = array<i64: 1, 32>}, {pipeline_mode = #tpu.pipeline_mode<synchronous>, transform_indices = @transform_8, window_bounds = array<i64: 32, 128>}, {pipeline_mode = #tpu.pipeline_mode<synchronous>, transform_indices = @transform_9, window_bounds = array<i64: 1, 128>}, {pipeline_mode = #tpu.pipeline_mode<synchronous>, transform_indices = @transform_10, window_bounds = array<i64: 1, 128>}, {pipeline_mode = #tpu.pipeline_mode<synchronous>, transform_indices = @transform_11, window_bounds = array<i64: 1, 128>}, {pipeline_mode = #tpu.pipeline_mode<synchronous>, transform_indices = @transform_12, window_bounds = array<i64: 128, 32>}, {pipeline_mode = #tpu.pipeline_mode<synchronous>, transform_indices = @transform_13, window_bounds = array<i64: 1, 32>}, {transform_indices = @transform_14, window_bounds = array<i64: 2, 8, 32>}]} {
    %c0 = arith.constant 0 : index
    %c0_0 = arith.constant 0 : index
    %c0_1 = arith.constant 0 : index
    %0 = vector.load %arg1[%c0, %c0_0, %c0_1] : memref<2x8x32xf32, #tpu.memory_space<vmem>>, vector<2x8x32xf32>
    %1 = vector.shape_cast %0 : vector<2x8x32xf32> to vector<16x32xf32>
    %c0_2 = arith.constant 0 : index
    %c0_3 = arith.constant 0 : index
    %2 = vector.load %arg2[%c0_2, %c0_3] : memref<1x32xf32, #tpu.memory_space<vmem>>, vector<1x32xf32>
    %c0_4 = arith.constant 0 : index
    %c0_5 = arith.constant 0 : index
    %3 = vector.load %arg3[%c0_4, %c0_5] : memref<1x32xf32, #tpu.memory_space<vmem>>, vector<1x32xf32>
    %cst = arith.constant dense<0.000000e+00> : vector<16xf32>
    %4 = vector.multi_reduction <add>, %1, %cst [1] : vector<16x32xf32> to vector<16xf32>
    %5 = vector.shape_cast %4 : vector<16xf32> to vector<16x1xf32>
    %cst_6 = arith.constant 3.200000e+01 : f32
    %6 = vector.broadcast %cst_6 : f32 to vector<16x1xf32>
    %7 = arith.divf %5, %6 : vector<16x1xf32>
    %8 = vector.broadcast %7 : vector<16x1xf32> to vector<16x32xf32>
    %9 = arith.subf %1, %8 : vector<16x32xf32>
    %10 = arith.mulf %9, %9 : vector<16x32xf32>
    %cst_7 = arith.constant dense<0.000000e+00> : vector<16xf32>
    %11 = vector.multi_reduction <add>, %10, %cst_7 [1] : vector<16x32xf32> to vector<16xf32>
    %12 = vector.shape_cast %11 : vector<16xf32> to vector<16x1xf32>
    %cst_8 = arith.constant 3.200000e+01 : f32
    %13 = vector.broadcast %cst_8 : f32 to vector<16x1xf32>
    %14 = arith.divf %12, %13 : vector<16x1xf32>
    %cst_9 = arith.constant 9.99999974E-6 : f32
    %15 = vector.broadcast %cst_9 : f32 to vector<16x1xf32>
    %16 = arith.addf %14, %15 : vector<16x1xf32>
    %17 = math.rsqrt %16 : vector<16x1xf32>
    %18 = vector.broadcast %17 : vector<16x1xf32> to vector<16x32xf32>
    %19 = arith.mulf %9, %18 : vector<16x32xf32>
    %20 = vector.broadcast %2 : vector<1x32xf32> to vector<16x32xf32>
    %21 = arith.mulf %19, %20 : vector<16x32xf32>
    %22 = vector.broadcast %3 : vector<1x32xf32> to vector<16x32xf32>
    %23 = arith.addf %21, %22 : vector<16x32xf32>
    %c0_10 = arith.constant 0 : index
    %c0_11 = arith.constant 0 : index
    %24 = vector.load %arg4[%c0_10, %c0_11] : memref<32x96xf32, #tpu.memory_space<vmem>>, vector<32x96xf32>
    %cst_12 = arith.constant dense<0.000000e+00> : vector<16x96xf32>
    %25 = tpu.matmul %23, %24, %cst_12 {dimension_numbers = #tpu.dot_dimension_numbers<[1], [0], [0], [1], [0, 0, 1, 1], [], []>} : vector<16x32xf32>, vector<32x96xf32>, vector<16x96xf32> -> vector<16x96xf32>
    %26 = vector.extract_strided_slice %25 {offsets = [0, 0], sizes = [16, 32], strides = [1, 1]} : vector<16x96xf32> to vector<16x32xf32>
    %cst_13 = arith.constant 0.176776692 : f32
    %27 = vector.broadcast %cst_13 : f32 to vector<16x32xf32>
    %28 = arith.mulf %26, %27 : vector<16x32xf32>
    %29 = vector.extract_strided_slice %25 {offsets = [0, 32], sizes = [16, 32], strides = [1, 1]} : vector<16x96xf32> to vector<16x32xf32>
    %30 = vector.extract_strided_slice %25 {offsets = [0, 64], sizes = [16, 32], strides = [1, 1]} : vector<16x96xf32> to vector<16x32xf32>
    %31 = vector.extract_strided_slice %28 {offsets = [0, 0], sizes = [16, 8], strides = [1, 1]} : vector<16x32xf32> to vector<16x8xf32>
    %32 = vector.shape_cast %31 : vector<16x8xf32> to vector<2x8x8xf32>
    %33 = vector.extract_strided_slice %28 {offsets = [0, 8], sizes = [16, 8], strides = [1, 1]} : vector<16x32xf32> to vector<16x8xf32>
    %34 = vector.shape_cast %33 : vector<16x8xf32> to vector<2x8x8xf32>
    %35 = vector.extract_strided_slice %28 {offsets = [0, 16], sizes = [16, 8], strides = [1, 1]} : vector<16x32xf32> to vector<16x8xf32>
    %36 = vector.shape_cast %35 : vector<16x8xf32> to vector<2x8x8xf32>
    %37 = vector.extract_strided_slice %28 {offsets = [0, 24], sizes = [16, 8], strides = [1, 1]} : vector<16x32xf32> to vector<16x8xf32>
    %38 = vector.shape_cast %37 : vector<16x8xf32> to vector<2x8x8xf32>
    %39 = tpu.concatenate %32, %34, %36, %38 in 0 : vector<2x8x8xf32>, vector<2x8x8xf32>, vector<2x8x8xf32>, vector<2x8x8xf32> -> vector<8x8x8xf32>
    %40 = vector.extract_strided_slice %29 {offsets = [0, 0], sizes = [16, 8], strides = [1, 1]} : vector<16x32xf32> to vector<16x8xf32>
    %41 = vector.shape_cast %40 : vector<16x8xf32> to vector<2x8x8xf32>
    %42 = vector.extract_strided_slice %29 {offsets = [0, 8], sizes = [16, 8], strides = [1, 1]} : vector<16x32xf32> to vector<16x8xf32>
    %43 = vector.shape_cast %42 : vector<16x8xf32> to vector<2x8x8xf32>
    %44 = vector.extract_strided_slice %29 {offsets = [0, 16], sizes = [16, 8], strides = [1, 1]} : vector<16x32xf32> to vector<16x8xf32>
    %45 = vector.shape_cast %44 : vector<16x8xf32> to vector<2x8x8xf32>
    %46 = vector.extract_strided_slice %29 {offsets = [0, 24], sizes = [16, 8], strides = [1, 1]} : vector<16x32xf32> to vector<16x8xf32>
    %47 = vector.shape_cast %46 : vector<16x8xf32> to vector<2x8x8xf32>
    %48 = tpu.concatenate %41, %43, %45, %47 in 0 : vector<2x8x8xf32>, vector<2x8x8xf32>, vector<2x8x8xf32>, vector<2x8x8xf32> -> vector<8x8x8xf32>
    %49 = vector.extract_strided_slice %30 {offsets = [0, 0], sizes = [16, 8], strides = [1, 1]} : vector<16x32xf32> to vector<16x8xf32>
    %50 = vector.shape_cast %49 : vector<16x8xf32> to vector<2x8x8xf32>
    %51 = vector.extract_strided_slice %30 {offsets = [0, 8], sizes = [16, 8], strides = [1, 1]} : vector<16x32xf32> to vector<16x8xf32>
    %52 = vector.shape_cast %51 : vector<16x8xf32> to vector<2x8x8xf32>
    %53 = vector.extract_strided_slice %30 {offsets = [0, 16], sizes = [16, 8], strides = [1, 1]} : vector<16x32xf32> to vector<16x8xf32>
    %54 = vector.shape_cast %53 : vector<16x8xf32> to vector<2x8x8xf32>
    %55 = vector.extract_strided_slice %30 {offsets = [0, 24], sizes = [16, 8], strides = [1, 1]} : vector<16x32xf32> to vector<16x8xf32>
    %56 = vector.shape_cast %55 : vector<16x8xf32> to vector<2x8x8xf32>
    %57 = tpu.concatenate %50, %52, %54, %56 in 0 : vector<2x8x8xf32>, vector<2x8x8xf32>, vector<2x8x8xf32>, vector<2x8x8xf32> -> vector<8x8x8xf32>
    "tpu.trace_start"() <{level = 10 : i32, message = "bqd,bkd->bqk"}> : () -> ()
    %cst_14 = arith.constant dense<0.000000e+00> : vector<8x8x8xf32>
    %58 = tpu.matmul %39, %48, %cst_14 {dimension_numbers = #tpu.dot_dimension_numbers<[2], [2], [1], [1], [0, 0, 0, 1, 1, 1], [0], [0]>} : vector<8x8x8xf32>, vector<8x8x8xf32>, vector<8x8x8xf32> -> vector<8x8x8xf32>
    "tpu.trace_stop"() : () -> ()
    %59 = tpu.iota {dimensions = array<i32: 0>} : vector<8x8xi32>
    %60 = tpu.iota {dimensions = array<i32: 1>} : vector<8x8xi32>
    %61 = arith.cmpi sle, %60, %59 : vector<8x8xi32>
    %62 = vector.shape_cast %61 : vector<8x8xi1> to vector<1x8x8xi1>
    %cst_15 = arith.constant 0xFF800000 : f32
    %63 = vector.shape_cast %62 : vector<1x8x8xi1> to vector<1x8x8xi1>
    %64 = vector.broadcast %63 : vector<1x8x8xi1> to vector<8x8x8xi1>
    %65 = vector.broadcast %cst_15 : f32 to vector<8x8x8xf32>
    %66 = arith.select %64, %58, %65 : vector<8x8x8xi1>, vector<8x8x8xf32>
    %cst_16 = arith.constant dense<0xFF800000> : vector<8x8xf32>
    %67 = vector.multi_reduction <maximumf>, %66, %cst_16 [2] : vector<8x8x8xf32> to vector<8x8xf32>
    %68 = vector.shape_cast %67 : vector<8x8xf32> to vector<8x8x1xf32>
    %69 = vector.broadcast %68 : vector<8x8x1xf32> to vector<8x8x8xf32>
    %70 = arith.subf %66, %69 : vector<8x8x8xf32>
    %71 = math.exp %70 : vector<8x8x8xf32>
    %cst_17 = arith.constant dense<0.000000e+00> : vector<8x8xf32>
    %72 = vector.multi_reduction <add>, %71, %cst_17 [2] : vector<8x8x8xf32> to vector<8x8xf32>
    %73 = vector.shape_cast %72 : vector<8x8xf32> to vector<8x8x1xf32>
    %74 = tpu.reciprocal %73 {approx = true} : vector<8x8x1xf32> -> vector<8x8x1xf32>
    %75 = vector.broadcast %74 : vector<8x8x1xf32> to vector<8x8x8xf32>
    %76 = arith.mulf %71, %75 : vector<8x8x8xf32>
    "tpu.trace_start"() <{level = 10 : i32, message = "bqk,bkd->bqd"}> : () -> ()
    %cst_18 = arith.constant dense<0.000000e+00> : vector<8x8x8xf32>
    %77 = tpu.matmul %76, %57, %cst_18 {dimension_numbers = #tpu.dot_dimension_numbers<[2], [1], [1], [2], [0, 0, 0, 1, 1, 2], [0], [0]>} : vector<8x8x8xf32>, vector<8x8x8xf32>, vector<8x8x8xf32> -> vector<8x8x8xf32>
    "tpu.trace_stop"() : () -> ()
    %78 = vector.extract_strided_slice %77 {offsets = [0, 0, 0], sizes = [2, 8, 8], strides = [1, 1, 1]} : vector<8x8x8xf32> to vector<2x8x8xf32>
    %79 = vector.shape_cast %78 : vector<2x8x8xf32> to vector<16x8xf32>
    %80 = vector.extract_strided_slice %77 {offsets = [2, 0, 0], sizes = [2, 8, 8], strides = [1, 1, 1]} : vector<8x8x8xf32> to vector<2x8x8xf32>
    %81 = vector.shape_cast %80 : vector<2x8x8xf32> to vector<16x8xf32>
    %82 = vector.extract_strided_slice %77 {offsets = [4, 0, 0], sizes = [2, 8, 8], strides = [1, 1, 1]} : vector<8x8x8xf32> to vector<2x8x8xf32>
    %83 = vector.shape_cast %82 : vector<2x8x8xf32> to vector<16x8xf32>
    %84 = vector.extract_strided_slice %77 {offsets = [6, 0, 0], sizes = [2, 8, 8], strides = [1, 1, 1]} : vector<8x8x8xf32> to vector<2x8x8xf32>
    %85 = vector.shape_cast %84 : vector<2x8x8xf32> to vector<16x8xf32>
    %86 = tpu.concatenate %79, %81, %83, %85 in 1 : vector<16x8xf32>, vector<16x8xf32>, vector<16x8xf32>, vector<16x8xf32> -> vector<16x32xf32>
    %c0_19 = arith.constant 0 : index
    %c0_20 = arith.constant 0 : index
    %87 = vector.load %arg5[%c0_19, %c0_20] : memref<32x32xf32, #tpu.memory_space<vmem>>, vector<32x32xf32>
    %cst_21 = arith.constant dense<0.000000e+00> : vector<16x32xf32>
    %88 = tpu.matmul %86, %87, %cst_21 {dimension_numbers = #tpu.dot_dimension_numbers<[1], [0], [0], [1], [0, 0, 1, 1], [], []>} : vector<16x32xf32>, vector<32x32xf32>, vector<16x32xf32> -> vector<16x32xf32>
    %c0_22 = arith.constant 0 : index
    %c0_23 = arith.constant 0 : index
    %89 = vector.load %arg6[%c0_22, %c0_23] : memref<1x32xf32, #tpu.memory_space<vmem>>, vector<1x32xf32>
    %90 = vector.broadcast %89 : vector<1x32xf32> to vector<16x32xf32>
    %91 = arith.addf %88, %90 : vector<16x32xf32>
    %92 = arith.addf %1, %91 : vector<16x32xf32>
    %c0_24 = arith.constant 0 : index
    %c0_25 = arith.constant 0 : index
    %93 = vector.load %arg7[%c0_24, %c0_25] : memref<1x32xf32, #tpu.memory_space<vmem>>, vector<1x32xf32>
    %c0_26 = arith.constant 0 : index
    %c0_27 = arith.constant 0 : index
    %94 = vector.load %arg8[%c0_26, %c0_27] : memref<1x32xf32, #tpu.memory_space<vmem>>, vector<1x32xf32>
    %cst_28 = arith.constant dense<0.000000e+00> : vector<16xf32>
    %95 = vector.multi_reduction <add>, %92, %cst_28 [1] : vector<16x32xf32> to vector<16xf32>
    %96 = vector.shape_cast %95 : vector<16xf32> to vector<16x1xf32>
    %cst_29 = arith.constant 3.200000e+01 : f32
    %97 = vector.broadcast %cst_29 : f32 to vector<16x1xf32>
    %98 = arith.divf %96, %97 : vector<16x1xf32>
    %99 = vector.broadcast %98 : vector<16x1xf32> to vector<16x32xf32>
    %100 = arith.subf %92, %99 : vector<16x32xf32>
    %101 = arith.mulf %100, %100 : vector<16x32xf32>
    %cst_30 = arith.constant dense<0.000000e+00> : vector<16xf32>
    %102 = vector.multi_reduction <add>, %101, %cst_30 [1] : vector<16x32xf32> to vector<16xf32>
    %103 = vector.shape_cast %102 : vector<16xf32> to vector<16x1xf32>
    %cst_31 = arith.constant 3.200000e+01 : f32
    %104 = vector.broadcast %cst_31 : f32 to vector<16x1xf32>
    %105 = arith.divf %103, %104 : vector<16x1xf32>
    %cst_32 = arith.constant 9.99999974E-6 : f32
    %106 = vector.broadcast %cst_32 : f32 to vector<16x1xf32>
    %107 = arith.addf %105, %106 : vector<16x1xf32>
    %108 = math.rsqrt %107 : vector<16x1xf32>
    %109 = vector.broadcast %108 : vector<16x1xf32> to vector<16x32xf32>
    %110 = arith.mulf %100, %109 : vector<16x32xf32>
    %111 = vector.broadcast %93 : vector<1x32xf32> to vector<16x32xf32>
    %112 = arith.mulf %110, %111 : vector<16x32xf32>
    %113 = vector.broadcast %94 : vector<1x32xf32> to vector<16x32xf32>
    %114 = arith.addf %112, %113 : vector<16x32xf32>
    %c0_33 = arith.constant 0 : index
    %c0_34 = arith.constant 0 : index
    %115 = vector.load %arg9[%c0_33, %c0_34] : memref<32x128xf32, #tpu.memory_space<vmem>>, vector<32x128xf32>
    %cst_35 = arith.constant dense<0.000000e+00> : vector<16x128xf32>
    %116 = tpu.matmul %114, %115, %cst_35 {dimension_numbers = #tpu.dot_dimension_numbers<[1], [0], [0], [1], [0, 0, 1, 1], [], []>} : vector<16x32xf32>, vector<32x128xf32>, vector<16x128xf32> -> vector<16x128xf32>
    %c0_36 = arith.constant 0 : index
    %c0_37 = arith.constant 0 : index
    %117 = vector.load %arg10[%c0_36, %c0_37] : memref<1x128xf32, #tpu.memory_space<vmem>>, vector<1x128xf32>
    %118 = vector.broadcast %117 : vector<1x128xf32> to vector<16x128xf32>
    %119 = arith.addf %116, %118 : vector<16x128xf32>
    %c0_38 = arith.constant 0 : index
    %c0_39 = arith.constant 0 : index
    %120 = vector.load %arg11[%c0_38, %c0_39] : memref<1x128xf32, #tpu.memory_space<vmem>>, vector<1x128xf32>
    %c0_40 = arith.constant 0 : index
    %c0_41 = arith.constant 0 : index
    %121 = vector.load %arg12[%c0_40, %c0_41] : memref<1x128xf32, #tpu.memory_space<vmem>>, vector<1x128xf32>
    %cst_42 = arith.constant dense<0.000000e+00> : vector<16xf32>
    %122 = vector.multi_reduction <add>, %119, %cst_42 [1] : vector<16x128xf32> to vector<16xf32>
    %123 = vector.shape_cast %122 : vector<16xf32> to vector<16x1xf32>
    %cst_43 = arith.constant 1.280000e+02 : f32
    %124 = vector.broadcast %cst_43 : f32 to vector<16x1xf32>
    %125 = arith.divf %123, %124 : vector<16x1xf32>
    %126 = vector.broadcast %125 : vector<16x1xf32> to vector<16x128xf32>
    %127 = arith.subf %119, %126 : vector<16x128xf32>
    %128 = arith.mulf %127, %127 : vector<16x128xf32>
    %cst_44 = arith.constant dense<0.000000e+00> : vector<16xf32>
    %129 = vector.multi_reduction <add>, %128, %cst_44 [1] : vector<16x128xf32> to vector<16xf32>
    %130 = vector.shape_cast %129 : vector<16xf32> to vector<16x1xf32>
    %cst_45 = arith.constant 1.280000e+02 : f32
    %131 = vector.broadcast %cst_45 : f32 to vector<16x1xf32>
    %132 = arith.divf %130, %131 : vector<16x1xf32>
    %cst_46 = arith.constant 9.99999974E-6 : f32
    %133 = vector.broadcast %cst_46 : f32 to vector<16x1xf32>
    %134 = arith.addf %132, %133 : vector<16x1xf32>
    %135 = math.rsqrt %134 : vector<16x1xf32>
    %136 = vector.broadcast %135 : vector<16x1xf32> to vector<16x128xf32>
    %137 = arith.mulf %127, %136 : vector<16x128xf32>
    %138 = vector.broadcast %120 : vector<1x128xf32> to vector<16x128xf32>
    %139 = arith.mulf %137, %138 : vector<16x128xf32>
    %140 = vector.broadcast %121 : vector<1x128xf32> to vector<16x128xf32>
    %141 = arith.addf %139, %140 : vector<16x128xf32>
    %cst_47 = arith.constant 0.000000e+00 : f32
    %142 = vector.broadcast %cst_47 : f32 to vector<16x128xf32>
    %143 = arith.maximumf %141, %142 : vector<16x128xf32>
    %c0_48 = arith.constant 0 : index
    %c0_49 = arith.constant 0 : index
    %144 = vector.load %arg13[%c0_48, %c0_49] : memref<128x32xf32, #tpu.memory_space<vmem>>, vector<128x32xf32>
    %cst_50 = arith.constant dense<0.000000e+00> : vector<16x32xf32>
    %145 = tpu.matmul %143, %144, %cst_50 {dimension_numbers = #tpu.dot_dimension_numbers<[1], [0], [0], [1], [0, 0, 1, 1], [], []>} : vector<16x128xf32>, vector<128x32xf32>, vector<16x32xf32> -> vector<16x32xf32>
    %c0_51 = arith.constant 0 : index
    %c0_52 = arith.constant 0 : index
    %146 = vector.load %arg14[%c0_51, %c0_52] : memref<1x32xf32, #tpu.memory_space<vmem>>, vector<1x32xf32>
    %147 = vector.broadcast %146 : vector<1x32xf32> to vector<16x32xf32>
    %148 = arith.addf %145, %147 : vector<16x32xf32>
    %149 = arith.addf %92, %148 : vector<16x32xf32>
    %150 = vector.shape_cast %149 : vector<16x32xf32> to vector<2x8x32xf32>
    %c0_53 = arith.constant 0 : index
    %c0_54 = arith.constant 0 : index
    %c0_55 = arith.constant 0 : index
    %151 = vector.load %arg15[%c0_53, %c0_54, %c0_55] : memref<2x8x32xf32, #tpu.memory_space<vmem>>, vector<2x8x32xf32>
    tpu.vector_store %arg15[%c0_53, %c0_54, %c0_55], %150 {strides = array<i32>} : memref<2x8x32xf32, #tpu.memory_space<vmem>>, vector<2x8x32xf32>,
    return
  }
  func.func @transform_0(%arg0: i32) -> (i32, i32, i32) {
    %c0_i32 = arith.constant 0 : i32
    %c0_i32_0 = arith.constant 0 : i32
    %c0_i32_1 = arith.constant 0 : i32
    return %arg0, %c0_i32, %c0_i32_0 : i32, i32, i32
  }
  func.func @transform_1(%arg0: i32) -> (i32, i32) {
    %c0_i32 = arith.constant 0 : i32
    %c0_i32_0 = arith.constant 0 : i32
    %c0_i32_1 = arith.constant 0 : i32
    return %c0_i32, %c0_i32_0 : i32, i32
  }
  func.func @transform_2(%arg0: i32) -> (i32, i32) {
    %c0_i32 = arith.constant 0 : i32
    %c0_i32_0 = arith.constant 0 : i32
    %c0_i32_1 = arith.constant 0 : i32
    return %c0_i32, %c0_i32_0 : i32, i32
  }
  func.func @transform_3(%arg0: i32) -> (i32, i32) {
    %c0_i32 = arith.constant 0 : i32
    %c0_i32_0 = arith.constant 0 : i32
    %c0_i32_1 = arith.constant 0 : i32
    return %c0_i32, %c0_i32_0 : i32, i32
  }
  func.func @transform_4(%arg0: i32) -> (i32, i32) {
    %c0_i32 = arith.constant 0 : i32
    %c0_i32_0 = arith.constant 0 : i32
    %c0_i32_1 = arith.constant 0 : i32
    return %c0_i32, %c0_i32_0 : i32, i32
  }
  func.func @transform_5(%arg0: i32) -> (i32, i32) {
    %c0_i32 = arith.constant 0 : i32
    %c0_i32_0 = arith.constant 0 : i32
    %c0_i32_1 = arith.constant 0 : i32
    return %c0_i32, %c0_i32_0 : i32, i32
  }
  func.func @transform_6(%arg0: i32) -> (i32, i32) {
    %c0_i32 = arith.constant 0 : i32
    %c0_i32_0 = arith.constant 0 : i32
    %c0_i32_1 = arith.constant 0 : i32
    return %c0_i32, %c0_i32_0 : i32, i32
  }
  func.func @transform_7(%arg0: i32) -> (i32, i32) {
    %c0_i32 = arith.constant 0 : i32
    %c0_i32_0 = arith.constant 0 : i32
    %c0_i32_1 = arith.constant 0 : i32
    return %c0_i32, %c0_i32_0 : i32, i32
  }
  func.func @transform_8(%arg0: i32) -> (i32, i32) {
    %c0_i32 = arith.constant 0 : i32
    %c0_i32_0 = arith.constant 0 : i32
    %c0_i32_1 = arith.constant 0 : i32
    return %c0_i32, %c0_i32_0 : i32, i32
  }
  func.func @transform_9(%arg0: i32) -> (i32, i32) {
    %c0_i32 = arith.constant 0 : i32
    %c0_i32_0 = arith.constant 0 : i32
    %c0_i32_1 = arith.constant 0 : i32
    return %c0_i32, %c0_i32_0 : i32, i32
  }
  func.func @transform_10(%arg0: i32) -> (i32, i32) {
    %c0_i32 = arith.constant 0 : i32
    %c0_i32_0 = arith.constant 0 : i32
    %c0_i32_1 = arith.constant 0 : i32
    return %c0_i32, %c0_i32_0 : i32, i32
  }
  func.func @transform_11(%arg0: i32) -> (i32, i32) {
    %c0_i32 = arith.constant 0 : i32
    %c0_i32_0 = arith.constant 0 : i32
    %c0_i32_1 = arith.constant 0 : i32
    return %c0_i32, %c0_i32_0 : i32, i32
  }
  func.func @transform_12(%arg0: i32) -> (i32, i32) {
    %c0_i32 = arith.constant 0 : i32
    %c0_i32_0 = arith.constant 0 : i32
    %c0_i32_1 = arith.constant 0 : i32
    return %c0_i32, %c0_i32_0 : i32, i32
  }
  func.func @transform_13(%arg0: i32) -> (i32, i32) {
    %c0_i32 = arith.constant 0 : i32
    %c0_i32_0 = arith.constant 0 : i32
    %c0_i32_1 = arith.constant 0 : i32
    return %c0_i32, %c0_i32_0 : i32, i32
  }
  func.func @transform_14(%arg0: i32) -> (i32, i32, i32) {
    %c0_i32 = arith.constant 0 : i32
    %c0_i32_0 = arith.constant 0 : i32
    %c0_i32_1 = arith.constant 0 : i32
    return %arg0, %c0_i32, %c0_i32_0 : i32, i32, i32
  }
}

</mosaic_0001>

<llo_original>
// kernel: tpu_custom_call.1
$region0: #{tpu_custom_call.1}
  #allocation0 [shape = 'u32[]', space=smem, size = 0x4, offset = 0x4, fixed_abs, tag = 'smem constant byte address 0x4 - core index']
  #allocation1 [shape = 'u32[72,128]{1,0:T(1,128)}', space=vmem, size = 0x9000, scoped, tag = 'internal scratch']
  %s0 = inlined_call_operand.vmem [shape: f32[2,8,32], index: 0, kind: input, shape index: {}]
  %s1 = inlined_call_operand.vmem [shape: f32[1,32], index: 1, kind: input, shape index: {}]
  %s2 = inlined_call_operand.vmem [shape: f32[1,32], index: 2, kind: input, shape index: {}]
  %s3 = inlined_call_operand.vmem [shape: f32[32,96], index: 3, kind: input, shape index: {}]
  %s4 = inlined_call_operand.vmem [shape: f32[32,32], index: 4, kind: input, shape index: {}]
  %s5 = inlined_call_operand.vmem [shape: f32[1,32], index: 5, kind: input, shape index: {}]
  %s6 = inlined_call_operand.vmem [shape: f32[1,32], index: 6, kind: input, shape index: {}]
  %s7 = inlined_call_operand.vmem [shape: f32[1,32], index: 7, kind: input, shape index: {}]
  %s8 = inlined_call_operand.vmem [shape: f32[32,128], index: 8, kind: input, shape index: {}]
  %s9 = inlined_call_operand.vmem [shape: f32[1,128], index: 9, kind: input, shape index: {}]
  %s10 = inlined_call_operand.vmem [shape: f32[1,128], index: 10, kind: input, shape index: {}]
  %s11 = inlined_call_operand.vmem [shape: f32[1,128], index: 11, kind: input, shape index: {}]
  %s12 = inlined_call_operand.vmem [shape: f32[128,32], index: 12, kind: input, shape index: {}]
  %s13 = inlined_call_operand.vmem [shape: f32[1,32], index: 13, kind: input, shape index: {}]
  %s14 = inlined_call_operand.hbm [shape: f32[2,8,32], index: 14, kind: output, shape index: {}]
  %s15 = sld [smem:[#allocation0]]
  $region66: #{tpu_custom_call.1} parent=0
    _
  %s17 = ssub.s32 1, %s15
  %s18 = scalar_select 0, %s17, %s15
  $region1: #{tpu_custom_call.1} parent=0
    #allocation2 [shape = 'u8[8192]{0}', space=vmem, size = 0x2000, scoped, tag = 'output window, operand 0, single buffered']
    #allocation3 [shape = 's32[1]{0}', space=sflag, size = 0x4, scoped, tag = 'scoped memory for tpu_custom_call.1']
    %19 = vsyncpa [#allocation3], 0
    // Predicated region
    $region2: #{tpu_custom_call.1} parent=1 // pred_check
      _
    $region3: #{tpu_custom_call.1} parent=1 // pred_check_branch
      %21 = sbr.rel (0) target = $region5
    $region4: #{tpu_custom_call.1} parent=1 // pred_region
      _
    $region5: #{tpu_custom_call.1} parent=1 // pred_fallthru
      _
    // Predicated region
    $region6: #{tpu_custom_call.1} parent=1 // pred_check
      _
    $region7: #{tpu_custom_call.1} parent=1 // pred_check_branch
      %23 = sbr.rel (0) target = $region9
    $region8: #{tpu_custom_call.1} parent=1 // pred_region
      _
    $region9: #{tpu_custom_call.1} parent=1 // pred_fallthru
      _
    // Predicated region
    $region10: #{tpu_custom_call.1} parent=1 // pred_check
      _
    $region11: #{tpu_custom_call.1} parent=1 // pred_check_branch
      %25 = sbr.rel (0) target = $region13
    $region12: #{tpu_custom_call.1} parent=1 // pred_region
      _
    $region13: #{tpu_custom_call.1} parent=1 // pred_fallthru
      _
    // Predicated region
    $region14: #{tpu_custom_call.1} parent=1 // pred_check
      _
    $region15: #{tpu_custom_call.1} parent=1 // pred_check_branch
      %27 = sbr.rel (0) target = $region17
    $region16: #{tpu_custom_call.1} parent=1 // pred_region
      _
    $region17: #{tpu_custom_call.1} parent=1 // pred_fallthru
      _
    // Predicated region
    $region18: #{tpu_custom_call.1} parent=1 // pred_check
      _
    $region19: #{tpu_custom_call.1} parent=1 // pred_check_branch
      %29 = sbr.rel (0) target = $region21
    $region20: #{tpu_custom_call.1} parent=1 // pred_region
      _
    $region21: #{tpu_custom_call.1} parent=1 // pred_fallthru
      _
    // Predicated region
    $region22: #{tpu_custom_call.1} parent=1 // pred_check
      _
    $region23: #{tpu_custom_call.1} parent=1 // pred_check_branch
      %31 = sbr.rel (0) target = $region25
    $region24: #{tpu_custom_call.1} parent=1 // pred_region
      _
    $region25: #{tpu_custom_call.1} parent=1 // pred_fallthru
      _
    // Predicated region
    $region26: #{tpu_custom_call.1} parent=1 // pred_check
      _
    $region27: #{tpu_custom_call.1} parent=1 // pred_check_branch
      %33 = sbr.rel (0) target = $region29
    $region28: #{tpu_custom_call.1} parent=1 // pred_region
      _
    $region29: #{tpu_custom_call.1} parent=1 // pred_fallthru
      _
    // Predicated region
    $region30: #{tpu_custom_call.1} parent=1 // pred_check
      _
    $region31: #{tpu_custom_call.1} parent=1 // pred_check_branch
      %35 = sbr.rel (0) target = $region33
    $region32: #{tpu_custom_call.1} parent=1 // pred_region
      _
    $region33: #{tpu_custom_call.1} parent=1 // pred_fallthru
      _
    // Predicated region
    $region34: #{tpu_custom_call.1} parent=1 // pred_check
      _
    $region35: #{tpu_custom_call.1} parent=1 // pred_check_branch
      %37 = sbr.rel (0) target = $region37
    $region36: #{tpu_custom_call.1} parent=1 // pred_region
      _
    $region37: #{tpu_custom_call.1} parent=1 // pred_fallthru
      _
    // Predicated region
    $region38: #{tpu_custom_call.1} parent=1 // pred_check
      _
    $region39: #{tpu_custom_call.1} parent=1 // pred_check_branch
      %39 = sbr.rel (0) target = $region41
    $region40: #{tpu_custom_call.1} parent=1 // pred_region
      _
    $region41: #{tpu_custom_call.1} parent=1 // pred_fallthru
      _
    // Predicated region
    $region42: #{tpu_custom_call.1} parent=1 // pred_check
      _
    $region43: #{tpu_custom_call.1} parent=1 // pred_check_branch
      %41 = sbr.rel (0) target = $region45
    $region44: #{tpu_custom_call.1} parent=1 // pred_region
      _
    $region45: #{tpu_custom_call.1} parent=1 // pred_fallthru
      _
    // Predicated region
    $region46: #{tpu_custom_call.1} parent=1 // pred_check
      _
    $region47: #{tpu_custom_call.1} parent=1 // pred_check_branch
      %43 = sbr.rel (0) target = $region49
    $region48: #{tpu_custom_call.1} parent=1 // pred_region
      _
    $region49: #{tpu_custom_call.1} parent=1 // pred_fallthru
      _
    // Predicated region
    $region50: #{tpu_custom_call.1} parent=1 // pred_check
      _
    $region51: #{tpu_custom_call.1} parent=1 // pred_check_branch
      %45 = sbr.rel (0) target = $region53
    $region52: #{tpu_custom_call.1} parent=1 // pred_region
      _
    $region53: #{tpu_custom_call.1} parent=1 // pred_fallthru
      _
    // Predicated region
    $region54: #{tpu_custom_call.1} parent=1 // pred_check
      _
    $region55: #{tpu_custom_call.1} parent=1 // pred_check_branch
      %47 = sbr.rel (0) target = $region57
    $region56: #{tpu_custom_call.1} parent=1 // pred_region
      _
    $region57: #{tpu_custom_call.1} parent=1 // pred_fallthru
      _
    %v48 = vld [vmem:[%s0] sm:$0xff]
    %v49 = vld [vmem:[%s0 + $0x8] sm:$0xff]
    %v50 = vld [vmem:[%s1] sm:$0x1]
    %v51 = vld [vmem:[%s2] sm:$0x1]
    %vm52 = vcmask 261120
    %v53 = vsel %vm52, %v48, 0.0
    %54 = vadd.xlane.f32.xlu0 %v53
    %v55 = vpop.xlane.xlu0 %54
    %v56 = vsel %vm52, %v49, 0.0
    %57 = vadd.xlane.f32.xlu0 %v56
    %v58 = vpop.xlane.xlu0 %57
    %v59 = vrcp.pop 32.0
    %v60 = vmul.f32 32.0, %v59
    %v61 = vsub.f32 1.0, %v60
    %v62 = vmul.f32 %v59, %v61
    %v63 = vadd.f32 %v59, %v62
    %vm64 = vweird.f32 %v59
    %v65 = vsel %vm64, %v59, %v63
    %v66 = vmul.f32 %v55, %v65
    %v67 = vmul.f32 %v58, %v65
    %v68 = vsub.f32 %v48, %v66
    %v69 = vsub.f32 %v49, %v67
    %v70 = vmul.f32 %v68, %v68
    %v71 = vmul.f32 %v69, %v69
    %v72 = vsel %vm52, %v70, 0.0
    %73 = vadd.xlane.f32.xlu0 %v72
    %v74 = vpop.xlane.xlu0 %73
    %v75 = vsel %vm52, %v71, 0.0
    %76 = vadd.xlane.f32.xlu0 %v75
    %v77 = vpop.xlane.xlu0 %76
    %v78 = vmul.f32 %v74, %v65
    %v79 = vmul.f32 %v77, %v65
    %v80 = vadd.f32 %v78, 1e-05
    %v81 = vadd.f32 %v79, 1e-05
    %v82 = vrsqrt.pop %v80
    %v83 = vmul.f32 %v82, %v80
    %v84 = vmul.f32 %v83, %v82
    %v85 = vmul.f32 0.5, %v84
    %v86 = vsub.f32 1.5, %v85
    %v87 = vmul.f32 %v82, %v86
    %vm88 = vweird.f32 %v80
    %vm89 = vweird.f32 %v82
    %vm90 = vmor %vm88, %vm89
    %v91 = vsel %vm90, %v82, %v87
    %v92 = vrsqrt.pop %v81
    %v93 = vmul.f32 %v92, %v81
    %v94 = vmul.f32 %v93, %v92
    %v95 = vmul.f32 0.5, %v94
    %v96 = vsub.f32 1.5, %v95
    %v97 = vmul.f32 %v92, %v96
    %vm98 = vweird.f32 %v81
    %vm99 = vweird.f32 %v92
    %vm100 = vmor %vm98, %vm99
    %v101 = vsel %vm100, %v92, %v97
    %v102 = vmul.f32 %v68, %v91
    %v103 = vmul.f32 %v69, %v101
    %v105 = vperm.slane %v50, 0
    %v107 = vmul.f32 %v102, %v105
    %v108 = vmul.f32 %v103, %v105
    %v110 = vperm.slane %v51, 0
    %v112 = vadd.f32 %v107, %v110
    %v113 = vadd.f32 %v108, %v110
    %v114 = vld [vmem:[%s3] sm:$0xff]
    %v115 = vld [vmem:[%s3 + $0x8] sm:$0xff]
    %v116 = vld [vmem:[%s3 + $0x10] sm:$0xff]
    %v117 = vld [vmem:[%s3 + $0x18] sm:$0xff]
    %v119 = vsel %vm52, %v112, 0
    %v122 = vsel %vm52, %v113, 0
    %124 = vmatpush.msra.mxu0 0.0
    %125 = vmatpush.msra.mxu0 0.0
    %126 = vmatpush.msra.mxu0 0.0
    %127 = vmatpush.msra.mxu0 0.0
    %128 = vmatpush.msra.mxu0 0.0
    %129 = vmatpush.msra.mxu0 0.0
    %130 = vmatpush.msra.mxu0 0.0
    %131 = vmatpush.msra.mxu0 0.0
    %132 = vmatpush.msra.mxu0 0.0
    %133 = vmatpush.msra.mxu0 0.0
    %134 = vmatpush.msra.mxu0 0.0
    %135 = vmatpush.msra.mxu0 0.0
    %136 = vmatpush.msra.mxu0 %v117
    %137 = vmatpush.msra.mxu0 %v116
    %138 = vmatpush.msra.mxu0 %v115
    %139 = vmatpush.msra.mxu0 %v114
    %140 = vmatmul.f32.gmra.mxu0 %v119
    %v141 = vpop.f32.mrf.mxu0
    %v142 = vadd.f32 0.0, %v141
    %143 = vmatmul.f32.gmra.mxu0 %v122
    %v144 = vpop.f32.mrf.mxu0
    %v145 = vadd.f32 0.0, %v144
    %146 = vdwg.mxu0
    %v147 = vmul.f32 %v142, 0.17677669
    %v148 = vmul.f32 %v145, 0.17677669
    %151 = vrot.lane.b32.xlu0 %v147, 120
    %v152 = vpop.permute.xlu0 %151
    %153 = vrot.lane.b32.xlu0 %v148, 120
    %v154 = vpop.permute.xlu0 %153
    %155 = vrot.lane.b32.xlu0 %v147, 112
    %v156 = vpop.permute.xlu0 %155
    %157 = vrot.lane.b32.xlu0 %v148, 112
    %v158 = vpop.permute.xlu0 %157
    %159 = vrot.lane.b32.xlu0 %v147, 104
    %v160 = vpop.permute.xlu0 %159
    %161 = vrot.lane.b32.xlu0 %v148, 104
    %v162 = vpop.permute.xlu0 %161
    %165 = vrot.lane.b32.xlu0 %v142, 120
    %v166 = vpop.permute.xlu0 %165
    %167 = vrot.lane.b32.xlu0 %v145, 120
    %v168 = vpop.permute.xlu0 %167
    %169 = vrot.lane.b32.xlu0 %v142, 112
    %v170 = vpop.permute.xlu0 %169
    %171 = vrot.lane.b32.xlu0 %v145, 112
    %v172 = vpop.permute.xlu0 %171
    %173 = vrot.lane.b32.xlu0 %v142, 104
    %v174 = vpop.permute.xlu0 %173
    %175 = vrot.lane.b32.xlu0 %v145, 104
    %v176 = vpop.permute.xlu0 %175
    %177 = vrot.lane.b32.xlu0 %v142, 96
    %v178 = vpop.permute.xlu0 %177
    %vm179 = vcmask 64512
    %v180 = vsel %vm179, %v147, 0
    %v182 = vsel %vm179, %v178, 0
    %184 = vmatpush.xpose.msra.mxu0 0.0
    %185 = vmatpush.xpose.msra.mxu0 0.0
    %186 = vmatpush.xpose.msra.mxu0 0.0
    %187 = vmatpush.xpose.msra.mxu0 0.0
    %188 = vmatpush.xpose.msra.mxu0 0.0
    %189 = vmatpush.xpose.msra.mxu0 0.0
    %190 = vmatpush.xpose.msra.mxu0 0.0
    %191 = vmatpush.xpose.msra.mxu0 0.0
    %192 = vmatpush.xpose.msra.mxu0 0.0
    %193 = vmatpush.xpose.msra.mxu0 0.0
    %194 = vmatpush.xpose.msra.mxu0 0.0
    %195 = vmatpush.xpose.msra.mxu0 0.0
    %196 = vmatpush.xpose.msra.mxu0 0.0
    %197 = vmatpush.xpose.msra.mxu0 0.0
    %198 = vmatpush.xpose.msra.mxu0 0.0
    %199 = vmatpush.xpose.msra.mxu0 %v182
    %200 = vmatmul.f32.gmra.mxu0 %v180
    %v201 = vpop.f32.mrf.mxu0
    %v202 = vadd.f32 0.0, %v201
    %203 = vdwg.mxu0
    %204 = vrot.lane.b32.xlu0 %v145, 96
    %v205 = vpop.permute.xlu0 %204
    %v206 = vsel %vm179, %v148, 0
    %v208 = vsel %vm179, %v205, 0
    %210 = vmatpush.xpose.msra.mxu0 0.0
    %211 = vmatpush.xpose.msra.mxu0 0.0
    %212 = vmatpush.xpose.msra.mxu0 0.0
    %213 = vmatpush.xpose.msra.mxu0 0.0
    %214 = vmatpush.xpose.msra.mxu0 0.0
    %215 = vmatpush.xpose.msra.mxu0 0.0
    %216 = vmatpush.xpose.msra.mxu0 0.0
    %217 = vmatpush.xpose.msra.mxu0 0.0
    %218 = vmatpush.xpose.msra.mxu0 0.0
    %219 = vmatpush.xpose.msra.mxu0 0.0
    %220 = vmatpush.xpose.msra.mxu0 0.0
    %221 = vmatpush.xpose.msra.mxu0 0.0
    %222 = vmatpush.xpose.msra.mxu0 0.0
    %223 = vmatpush.xpose.msra.mxu0 0.0
    %224 = vmatpush.xpose.msra.mxu0 0.0
    %225 = vmatpush.xpose.msra.mxu0 %v208
    %226 = vmatmul.f32.gmra.mxu0 %v206
    %v227 = vpop.f32.mrf.mxu0
    %v228 = vadd.f32 0.0, %v227
    %229 = vdwg.mxu0
    %230 = vrot.lane.b32.xlu0 %v166, 96
    %v231 = vpop.permute.xlu0 %230
    %v232 = vsel %vm179, %v152, 0
    %v234 = vsel %vm179, %v231, 0
    %236 = vmatpush.xpose.msra.mxu0 0.0
    %237 = vmatpush.xpose.msra.mxu0 0.0
    %238 = vmatpush.xpose.msra.mxu0 0.0
    %239 = vmatpush.xpose.msra.mxu0 0.0
    %240 = vmatpush.xpose.msra.mxu0 0.0
    %241 = vmatpush.xpose.msra.mxu0 0.0
    %242 = vmatpush.xpose.msra.mxu0 0.0
    %243 = vmatpush.xpose.msra.mxu0 0.0
    %244 = vmatpush.xpose.msra.mxu0 0.0
    %245 = vmatpush.xpose.msra.mxu0 0.0
    %246 = vmatpush.xpose.msra.mxu0 0.0
    %247 = vmatpush.xpose.msra.mxu0 0.0
    %248 = vmatpush.xpose.msra.mxu0 0.0
    %249 = vmatpush.xpose.msra.mxu0 0.0
    %250 = vmatpush.xpose.msra.mxu0 0.0
    %251 = vmatpush.xpose.msra.mxu0 %v234
    %252 = vmatmul.f32.gmra.mxu0 %v232
    %v253 = vpop.f32.mrf.mxu0
    %v254 = vadd.f32 0.0, %v253
    %255 = vdwg.mxu0
    %256 = vrot.lane.b32.xlu0 %v168, 96
    %v257 = vpop.permute.xlu0 %256
    %v258 = vsel %vm179, %v154, 0
    %v260 = vsel %vm179, %v257, 0
    %262 = vmatpush.xpose.msra.mxu0 0.0
    %263 = vmatpush.xpose.msra.mxu0 0.0
    %264 = vmatpush.xpose.msra.mxu0 0.0
    %265 = vmatpush.xpose.msra.mxu0 0.0
    %266 = vmatpush.xpose.msra.mxu0 0.0
    %267 = vmatpush.xpose.msra.mxu0 0.0
    %268 = vmatpush.xpose.msra.mxu0 0.0
    %269 = vmatpush.xpose.msra.mxu0 0.0
    %270 = vmatpush.xpose.msra.mxu0 0.0
    %271 = vmatpush.xpose.msra.mxu0 0.0
    %272 = vmatpush.xpose.msra.mxu0 0.0
    %273 = vmatpush.xpose.msra.mxu0 0.0
    %274 = vmatpush.xpose.msra.mxu0 0.0
    %275 = vmatpush.xpose.msra.mxu0 0.0
    %276 = vmatpush.xpose.msra.mxu0 0.0
    %277 = vmatpush.xpose.msra.mxu0 %v260
    %278 = vmatmul.f32.gmra.mxu0 %v258
    %v279 = vpop.f32.mrf.mxu0
    %v280 = vadd.f32 0.0, %v279
    %281 = vdwg.mxu0
    %282 = vrot.lane.b32.xlu0 %v170, 96
    %v283 = vpop.permute.xlu0 %282
    %v284 = vsel %vm179, %v156, 0
    %v286 = vsel %vm179, %v283, 0
    %288 = vmatpush.xpose.msra.mxu0 0.0
    %289 = vmatpush.xpose.msra.mxu0 0.0
    %290 = vmatpush.xpose.msra.mxu0 0.0
    %291 = vmatpush.xpose.msra.mxu0 0.0
    %292 = vmatpush.xpose.msra.mxu0 0.0
    %293 = vmatpush.xpose.msra.mxu0 0.0
    %294 = vmatpush.xpose.msra.mxu0 0.0
    %295 = vmatpush.xpose.msra.mxu0 0.0
    %296 = vmatpush.xpose.msra.mxu0 0.0
    %297 = vmatpush.xpose.msra.mxu0 0.0
    %298 = vmatpush.xpose.msra.mxu0 0.0
    %299 = vmatpush.xpose.msra.mxu0 0.0
    %300 = vmatpush.xpose.msra.mxu0 0.0
    %301 = vmatpush.xpose.msra.mxu0 0.0
    %302 = vmatpush.xpose.msra.mxu0 0.0
    %303 = vmatpush.xpose.msra.mxu0 %v286
    %304 = vmatmul.f32.gmra.mxu0 %v284
    %v305 = vpop.f32.mrf.mxu0
    %v306 = vadd.f32 0.0, %v305
    %307 = vdwg.mxu0
    %308 = vrot.lane.b32.xlu0 %v172, 96
    %v309 = vpop.permute.xlu0 %308
    %v310 = vsel %vm179, %v158, 0
    %v312 = vsel %vm179, %v309, 0
    %314 = vmatpush.xpose.msra.mxu0 0.0
    %315 = vmatpush.xpose.msra.mxu0 0.0
    %316 = vmatpush.xpose.msra.mxu0 0.0
    %317 = vmatpush.xpose.msra.mxu0 0.0
    %318 = vmatpush.xpose.msra.mxu0 0.0
    %319 = vmatpush.xpose.msra.mxu0 0.0
    %320 = vmatpush.xpose.msra.mxu0 0.0
    %321 = vmatpush.xpose.msra.mxu0 0.0
    %322 = vmatpush.xpose.msra.mxu0 0.0
    %323 = vmatpush.xpose.msra.mxu0 0.0
    %324 = vmatpush.xpose.msra.mxu0 0.0
    %325 = vmatpush.xpose.msra.mxu0 0.0
    %326 = vmatpush.xpose.msra.mxu0 0.0
    %327 = vmatpush.xpose.msra.mxu0 0.0
    %328 = vmatpush.xpose.msra.mxu0 0.0
    %329 = vmatpush.xpose.msra.mxu0 %v312
    %330 = vmatmul.f32.gmra.mxu0 %v310
    %v331 = vpop.f32.mrf.mxu0
    %v332 = vadd.f32 0.0, %v331
    %333 = vdwg.mxu0
    %334 = vrot.lane.b32.xlu0 %v174, 96
    %v335 = vpop.permute.xlu0 %334
    %v336 = vsel %vm179, %v160, 0
    %v338 = vsel %vm179, %v335, 0
    %340 = vmatpush.xpose.msra.mxu0 0.0
    %341 = vmatpush.xpose.msra.mxu0 0.0
    %342 = vmatpush.xpose.msra.mxu0 0.0
    %343 = vmatpush.xpose.msra.mxu0 0.0
    %344 = vmatpush.xpose.msra.mxu0 0.0
    %345 = vmatpush.xpose.msra.mxu0 0.0
    %346 = vmatpush.xpose.msra.mxu0 0.0
    %347 = vmatpush.xpose.msra.mxu0 0.0
    %348 = vmatpush.xpose.msra.mxu0 0.0
    %349 = vmatpush.xpose.msra.mxu0 0.0
    %350 = vmatpush.xpose.msra.mxu0 0.0
    %351 = vmatpush.xpose.msra.mxu0 0.0
    %352 = vmatpush.xpose.msra.mxu0 0.0
    %353 = vmatpush.xpose.msra.mxu0 0.0
    %354 = vmatpush.xpose.msra.mxu0 0.0
    %355 = vmatpush.xpose.msra.mxu0 %v338
    %356 = vmatmul.f32.gmra.mxu0 %v336
    %v357 = vpop.f32.mrf.mxu0
    %v358 = vadd.f32 0.0, %v357
    %359 = vdwg.mxu0
    %360 = vrot.lane.b32.xlu0 %v176, 96
    %v361 = vpop.permute.xlu0 %360
    %v362 = vsel %vm179, %v162, 0
    %v364 = vsel %vm179, %v361, 0
    %366 = vmatpush.xpose.msra.mxu0 0.0
    %367 = vmatpush.xpose.msra.mxu0 0.0
    %368 = vmatpush.xpose.msra.mxu0 0.0
    %369 = vmatpush.xpose.msra.mxu0 0.0
    %370 = vmatpush.xpose.msra.mxu0 0.0
    %371 = vmatpush.xpose.msra.mxu0 0.0
    %372 = vmatpush.xpose.msra.mxu0 0.0
    %373 = vmatpush.xpose.msra.mxu0 0.0
    %374 = vmatpush.xpose.msra.mxu0 0.0
    %375 = vmatpush.xpose.msra.mxu0 0.0
    %376 = vmatpush.xpose.msra.mxu0 0.0
    %377 = vmatpush.xpose.msra.mxu0 0.0
    %378 = vmatpush.xpose.msra.mxu0 0.0
    %379 = vmatpush.xpose.msra.mxu0 0.0
    %380 = vmatpush.xpose.msra.mxu0 0.0
    %381 = vmatpush.xpose.msra.mxu0 %v364
    %382 = vmatmul.f32.gmra.mxu0 %v362
    %v383 = vpop.f32.mrf.mxu0
    %v384 = vadd.f32 0.0, %v383
    %385 = vdwg.mxu0
    %v386 = vlaneseq
    %v387 = vshrl.u32 %v386, 7
    %v388 = vlaneseq
    %v389 = vand.u32 %v388, 127
    %vm390 = vcmp.le.s32.totalorder %v389, %v387
    %v391 = vsel %vm390, 1, 0
    %vm392 = vcmp.eq.s32.totalorder %v391, 1
    %v393 = vsel %vm392, %v202, -inf
    %v394 = vsel %vm392, %v228, -inf
    %v395 = vsel %vm392, %v254, -inf
    %v396 = vsel %vm392, %v280, -inf
    %v397 = vsel %vm392, %v306, -inf
    %v398 = vsel %vm392, %v332, -inf
    %v399 = vsel %vm392, %v358, -inf
    %v400 = vsel %vm392, %v384, -inf
    %v401 = vsel %vm179, %v393, -inf
    %402 = vmax.xlane.f32.xlu0 %v401
    %v403 = vpop.xlane.xlu0 %402
    %v404 = vsel %vm179, %v394, -inf
    %405 = vmax.xlane.f32.xlu0 %v404
    %v406 = vpop.xlane.xlu0 %405
    %v407 = vsel %vm179, %v395, -inf
    %408 = vmax.xlane.f32.xlu0 %v407
    %v409 = vpop.xlane.xlu0 %408
    %v410 = vsel %vm179, %v396, -inf
    %411 = vmax.xlane.f32.xlu0 %v410
    %v412 = vpop.xlane.xlu0 %411
    %v413 = vsel %vm179, %v397, -inf
    %414 = vmax.xlane.f32.xlu0 %v413
    %v415 = vpop.xlane.xlu0 %414
    %v416 = vsel %vm179, %v398, -inf
    %417 = vmax.xlane.f32.xlu0 %v416
    %v418 = vpop.xlane.xlu0 %417
    %v419 = vsel %vm179, %v399, -inf
    %420 = vmax.xlane.f32.xlu0 %v419
    %v421 = vpop.xlane.xlu0 %420
    %v422 = vsel %vm179, %v400, -inf
    %423 = vmax.xlane.f32.xlu0 %v422
    %v424 = vpop.xlane.xlu0 %423
    %v425 = vsub.f32 %v393, %v403
    %v426 = vsub.f32 %v394, %v406
    %v427 = vsub.f32 %v395, %v409
    %v428 = vsub.f32 %v396, %v412
    %v429 = vsub.f32 %v397, %v415
    %v430 = vsub.f32 %v398, %v418
    %v431 = vsub.f32 %v399, %v421
    %v432 = vsub.f32 %v400, %v424
    %v433 = vmul.f32 %v425, 1.442695
    %v434 = vpow.pop %v433
    %v435 = vmul.f32 %v426, 1.442695
    %v436 = vpow.pop %v435
    %v437 = vmul.f32 %v427, 1.442695
    %v438 = vpow.pop %v437
    %v439 = vmul.f32 %v428, 1.442695
    %v440 = vpow.pop %v439
    %v441 = vmul.f32 %v429, 1.442695
    %v442 = vpow.pop %v441
    %v443 = vmul.f32 %v430, 1.442695
    %v444 = vpow.pop %v443
    %v445 = vmul.f32 %v431, 1.442695
    %v446 = vpow.pop %v445
    %v447 = vmul.f32 %v432, 1.442695
    %v448 = vpow.pop %v447
    %v449 = vsel %vm179, %v434, 0.0
    %450 = vadd.xlane.f32.xlu0 %v449
    %v451 = vpop.xlane.xlu0 %450
    %v452 = vsel %vm179, %v436, 0.0
    %453 = vadd.xlane.f32.xlu0 %v452
    %v454 = vpop.xlane.xlu0 %453
    %v455 = vsel %vm179, %v438, 0.0
    %456 = vadd.xlane.f32.xlu0 %v455
    %v457 = vpop.xlane.xlu0 %456
    %v458 = vsel %vm179, %v440, 0.0
    %459 = vadd.xlane.f32.xlu0 %v458
    %v460 = vpop.xlane.xlu0 %459
    %v461 = vsel %vm179, %v442, 0.0
    %462 = vadd.xlane.f32.xlu0 %v461
    %v463 = vpop.xlane.xlu0 %462
    %v464 = vsel %vm179, %v444, 0.0
    %465 = vadd.xlane.f32.xlu0 %v464
    %v466 = vpop.xlane.xlu0 %465
    %v467 = vsel %vm179, %v446, 0.0
    %468 = vadd.xlane.f32.xlu0 %v467
    %v469 = vpop.xlane.xlu0 %468
    %v470 = vsel %vm179, %v448, 0.0
    %471 = vadd.xlane.f32.xlu0 %v470
    %v472 = vpop.xlane.xlu0 %471
    %v473 = vrcp.pop %v451
    %v474 = vrcp.pop %v454
    %v475 = vrcp.pop %v457
    %v476 = vrcp.pop %v460
    %v477 = vrcp.pop %v463
    %v478 = vrcp.pop %v466
    %v479 = vrcp.pop %v469
    %v480 = vrcp.pop %v472
    %v481 = vmul.f32 %v434, %v473
    %v482 = vmul.f32 %v436, %v474
    %v483 = vmul.f32 %v438, %v475
    %v484 = vmul.f32 %v440, %v476
    %v485 = vmul.f32 %v442, %v477
    %v486 = vmul.f32 %v444, %v478
    %v487 = vmul.f32 %v446, %v479
    %v488 = vmul.f32 %v448, %v480
    %489 = vrot.lane.b32.xlu0 %v142, 64
    %v490 = vpop.permute.xlu0 %489
    %v493 = vsel %vm179, %v481, 0
    %495 = vmatpush.msra.mxu0 0.0
    %496 = vmatpush.msra.mxu0 0.0
    %497 = vmatpush.msra.mxu0 0.0
    %498 = vmatpush.msra.mxu0 0.0
    %499 = vmatpush.msra.mxu0 0.0
    %500 = vmatpush.msra.mxu0 0.0
    %501 = vmatpush.msra.mxu0 0.0
    %502 = vmatpush.msra.mxu0 0.0
    %503 = vmatpush.msra.mxu0 0.0
    %504 = vmatpush.msra.mxu0 0.0
    %505 = vmatpush.msra.mxu0 0.0
    %506 = vmatpush.msra.mxu0 0.0
    %507 = vmatpush.msra.mxu0 0.0
    %508 = vmatpush.msra.mxu0 0.0
    %509 = vmatpush.msra.mxu0 0.0
    %510 = vmatpush.msra.mxu0 %v490
    %511 = vmatmul.f32.gmra.mxu0 %v493
    %v512 = vpop.f32.mrf.mxu0
    %v513 = vadd.f32 0.0, %v512
    %514 = vdwg.mxu0
    %515 = vrot.lane.b32.xlu0 %v145, 64
    %v516 = vpop.permute.xlu0 %515
    %v519 = vsel %vm179, %v482, 0
    %521 = vmatpush.msra.mxu0 0.0
    %522 = vmatpush.msra.mxu0 0.0
    %523 = vmatpush.msra.mxu0 0.0
    %524 = vmatpush.msra.mxu0 0.0
    %525 = vmatpush.msra.mxu0 0.0
    %526 = vmatpush.msra.mxu0 0.0
    %527 = vmatpush.msra.mxu0 0.0
    %528 = vmatpush.msra.mxu0 0.0
    %529 = vmatpush.msra.mxu0 0.0
    %530 = vmatpush.msra.mxu0 0.0
    %531 = vmatpush.msra.mxu0 0.0
    %532 = vmatpush.msra.mxu0 0.0
    %533 = vmatpush.msra.mxu0 0.0
    %534 = vmatpush.msra.mxu0 0.0
    %535 = vmatpush.msra.mxu0 0.0
    %536 = vmatpush.msra.mxu0 %v516
    %537 = vmatmul.f32.gmra.mxu0 %v519
    %v538 = vpop.f32.mrf.mxu0
    %v539 = vadd.f32 0.0, %v538
    %540 = vdwg.mxu0
    %541 = vrot.lane.b32.xlu0 %v166, 64
    %v542 = vpop.permute.xlu0 %541
    %v545 = vsel %vm179, %v483, 0
    %547 = vmatpush.msra.mxu0 0.0
    %548 = vmatpush.msra.mxu0 0.0
    %549 = vmatpush.msra.mxu0 0.0
    %550 = vmatpush.msra.mxu0 0.0
    %551 = vmatpush.msra.mxu0 0.0
    %552 = vmatpush.msra.mxu0 0.0
    %553 = vmatpush.msra.mxu0 0.0
    %554 = vmatpush.msra.mxu0 0.0
    %555 = vmatpush.msra.mxu0 0.0
    %556 = vmatpush.msra.mxu0 0.0
    %557 = vmatpush.msra.mxu0 0.0
    %558 = vmatpush.msra.mxu0 0.0
    %559 = vmatpush.msra.mxu0 0.0
    %560 = vmatpush.msra.mxu0 0.0
    %561 = vmatpush.msra.mxu0 0.0
    %562 = vmatpush.msra.mxu0 %v542
    %563 = vmatmul.f32.gmra.mxu0 %v545
    %v564 = vpop.f32.mrf.mxu0
    %v565 = vadd.f32 0.0, %v564
    %566 = vdwg.mxu0
    %567 = vrot.lane.b32.xlu0 %v168, 64
    %v568 = vpop.permute.xlu0 %567
    %v571 = vsel %vm179, %v484, 0
    %573 = vmatpush.msra.mxu0 0.0
    %574 = vmatpush.msra.mxu0 0.0
    %575 = vmatpush.msra.mxu0 0.0
    %576 = vmatpush.msra.mxu0 0.0
    %577 = vmatpush.msra.mxu0 0.0
    %578 = vmatpush.msra.mxu0 0.0
    %579 = vmatpush.msra.mxu0 0.0
    %580 = vmatpush.msra.mxu0 0.0
    %581 = vmatpush.msra.mxu0 0.0
    %582 = vmatpush.msra.mxu0 0.0
    %583 = vmatpush.msra.mxu0 0.0
    %584 = vmatpush.msra.mxu0 0.0
    %585 = vmatpush.msra.mxu0 0.0
    %586 = vmatpush.msra.mxu0 0.0
    %587 = vmatpush.msra.mxu0 0.0
    %588 = vmatpush.msra.mxu0 %v568
    %589 = vmatmul.f32.gmra.mxu0 %v571
    %v590 = vpop.f32.mrf.mxu0
    %v591 = vadd.f32 0.0, %v590
    %592 = vdwg.mxu0
    %593 = vrot.lane.b32.xlu0 %v170, 64
    %v594 = vpop.permute.xlu0 %593
    %v597 = vsel %vm179, %v485, 0
    %599 = vmatpush.msra.mxu0 0.0
    %600 = vmatpush.msra.mxu0 0.0
    %601 = vmatpush.msra.mxu0 0.0
    %602 = vmatpush.msra.mxu0 0.0
    %603 = vmatpush.msra.mxu0 0.0
    %604 = vmatpush.msra.mxu0 0.0
    %605 = vmatpush.msra.mxu0 0.0
    %606 = vmatpush.msra.mxu0 0.0
    %607 = vmatpush.msra.mxu0 0.0
    %608 = vmatpush.msra.mxu0 0.0
    %609 = vmatpush.msra.mxu0 0.0
    %610 = vmatpush.msra.mxu0 0.0
    %611 = vmatpush.msra.mxu0 0.0
    %612 = vmatpush.msra.mxu0 0.0
    %613 = vmatpush.msra.mxu0 0.0
    %614 = vmatpush.msra.mxu0 %v594
    %615 = vmatmul.f32.gmra.mxu0 %v597
    %v616 = vpop.f32.mrf.mxu0
    %v617 = vadd.f32 0.0, %v616
    %618 = vdwg.mxu0
    %619 = vrot.lane.b32.xlu0 %v172, 64
    %v620 = vpop.permute.xlu0 %619
    %v623 = vsel %vm179, %v486, 0
    %625 = vmatpush.msra.mxu0 0.0
    %626 = vmatpush.msra.mxu0 0.0
    %627 = vmatpush.msra.mxu0 0.0
    %628 = vmatpush.msra.mxu0 0.0
    %629 = vmatpush.msra.mxu0 0.0
    %630 = vmatpush.msra.mxu0 0.0
    %631 = vmatpush.msra.mxu0 0.0
    %632 = vmatpush.msra.mxu0 0.0
    %633 = vmatpush.msra.mxu0 0.0
    %634 = vmatpush.msra.mxu0 0.0
    %635 = vmatpush.msra.mxu0 0.0
    %636 = vmatpush.msra.mxu0 0.0
    %637 = vmatpush.msra.mxu0 0.0
    %638 = vmatpush.msra.mxu0 0.0
    %639 = vmatpush.msra.mxu0 0.0
    %640 = vmatpush.msra.mxu0 %v620
    %641 = vmatmul.f32.gmra.mxu0 %v623
    %v642 = vpop.f32.mrf.mxu0
    %v643 = vadd.f32 0.0, %v642
    %644 = vdwg.mxu0
    %645 = vrot.lane.b32.xlu0 %v174, 64
    %v646 = vpop.permute.xlu0 %645
    %v649 = vsel %vm179, %v487, 0
    %651 = vmatpush.msra.mxu0 0.0
    %652 = vmatpush.msra.mxu0 0.0
    %653 = vmatpush.msra.mxu0 0.0
    %654 = vmatpush.msra.mxu0 0.0
    %655 = vmatpush.msra.mxu0 0.0
    %656 = vmatpush.msra.mxu0 0.0
    %657 = vmatpush.msra.mxu0 0.0
    %658 = vmatpush.msra.mxu0 0.0
    %659 = vmatpush.msra.mxu0 0.0
    %660 = vmatpush.msra.mxu0 0.0
    %661 = vmatpush.msra.mxu0 0.0
    %662 = vmatpush.msra.mxu0 0.0
    %663 = vmatpush.msra.mxu0 0.0
    %664 = vmatpush.msra.mxu0 0.0
    %665 = vmatpush.msra.mxu0 0.0
    %666 = vmatpush.msra.mxu0 %v646
    %667 = vmatmul.f32.gmra.mxu0 %v649
    %v668 = vpop.f32.mrf.mxu0
    %v669 = vadd.f32 0.0, %v668
    %670 = vdwg.mxu0
    %671 = vrot.lane.b32.xlu0 %v176, 64
    %v672 = vpop.permute.xlu0 %671
    %v675 = vsel %vm179, %v488, 0
    %677 = vmatpush.msra.mxu0 0.0
    %678 = vmatpush.msra.mxu0 0.0
    %679 = vmatpush.msra.mxu0 0.0
    %680 = vmatpush.msra.mxu0 0.0
    %681 = vmatpush.msra.mxu0 0.0
    %682 = vmatpush.msra.mxu0 0.0
    %683 = vmatpush.msra.mxu0 0.0
    %684 = vmatpush.msra.mxu0 0.0
    %685 = vmatpush.msra.mxu0 0.0
    %686 = vmatpush.msra.mxu0 0.0
    %687 = vmatpush.msra.mxu0 0.0
    %688 = vmatpush.msra.mxu0 0.0
    %689 = vmatpush.msra.mxu0 0.0
    %690 = vmatpush.msra.mxu0 0.0
    %691 = vmatpush.msra.mxu0 0.0
    %692 = vmatpush.msra.mxu0 %v672
    %693 = vmatmul.f32.gmra.mxu0 %v675
    %v694 = vpop.f32.mrf.mxu0
    %v695 = vadd.f32 0.0, %v694
    %696 = vdwg.mxu0
    %699 = vrot.lane.b32.xlu0 %v565, 8
    %v700 = vpop.permute.xlu0 %699
    %701 = vrot.lane.b32.xlu0 %v591, 8
    %v702 = vpop.permute.xlu0 %701
    %707 = vrot.lane.b32.xlu0 %v617, 16
    %v708 = vpop.permute.xlu0 %707
    %709 = vrot.lane.b32.xlu0 %v643, 16
    %v710 = vpop.permute.xlu0 %709
    %715 = vrot.lane.b32.xlu0 %v669, 24
    %v716 = vpop.permute.xlu0 %715
    %717 = vrot.lane.b32.xlu0 %v695, 24
    %v718 = vpop.permute.xlu0 %717
    %v721 = vsel %vm179, %v513, %v700
    %v722 = vsel %vm179, %v539, %v702
    %vm723 = vcmask 130048
    %v724 = vsel %vm723, %v721, %v708
    %v725 = vsel %vm723, %v722, %v710
    %vm726 = vcmask 195584
    %v727 = vsel %vm726, %v724, %v716
    %v728 = vsel %vm726, %v725, %v718
    %v729 = vld [vmem:[%s4] sm:$0xff]
    %v730 = vld [vmem:[%s4 + $0x8] sm:$0xff]
    %v731 = vld [vmem:[%s4 + $0x10] sm:$0xff]
    %v732 = vld [vmem:[%s4 + $0x18] sm:$0xff]
    %v733 = vld [vmem:[%s5] sm:$0x1]
    %v735 = vperm.slane %v733, 0
    %v738 = vsel %vm52, %v727, 0
    %v741 = vsel %vm52, %v728, 0
    %743 = vmatpush.msra.mxu0 0.0
    %744 = vmatpush.msra.mxu0 0.0
    %745 = vmatpush.msra.mxu0 0.0
    %746 = vmatpush.msra.mxu0 0.0
    %747 = vmatpush.msra.mxu0 0.0
    %748 = vmatpush.msra.mxu0 0.0
    %749 = vmatpush.msra.mxu0 0.0
    %750 = vmatpush.msra.mxu0 0.0
    %751 = vmatpush.msra.mxu0 0.0
    %752 = vmatpush.msra.mxu0 0.0
    %753 = vmatpush.msra.mxu0 0.0
    %754 = vmatpush.msra.mxu0 0.0
    %755 = vmatpush.msra.mxu0 %v732
    %756 = vmatpush.msra.mxu0 %v731
    %757 = vmatpush.msra.mxu0 %v730
    %758 = vmatpush.msra.mxu0 %v729
    %759 = vmatmul.f32.gmra.mxu0 %v738
    %v760 = vpop.f32.mrf.mxu0
    %v761 = vadd.f32 %v735, %v760
    %762 = vmatmul.f32.gmra.mxu0 %v741
    %v763 = vpop.f32.mrf.mxu0
    %v764 = vadd.f32 %v735, %v763
    %765 = vdwg.mxu0
    %v766 = vadd.f32 %v48, %v761
    %v767 = vadd.f32 %v49, %v764
    %v768 = vld [vmem:[%s6] sm:$0x1]
    %v769 = vld [vmem:[%s7] sm:$0x1]
    %v770 = vsel %vm52, %v766, 0.0
    %771 = vadd.xlane.f32.xlu0 %v770
    %v772 = vpop.xlane.xlu0 %771
    %v773 = vsel %vm52, %v767, 0.0
    %774 = vadd.xlane.f32.xlu0 %v773
    %v775 = vpop.xlane.xlu0 %774
    %v776 = vmul.f32 %v772, %v65
    %v777 = vmul.f32 %v775, %v65
    %v778 = vsub.f32 %v766, %v776
    %v779 = vsub.f32 %v767, %v777
    %v780 = vmul.f32 %v778, %v778
    %v781 = vmul.f32 %v779, %v779
    %v782 = vsel %vm52, %v780, 0.0
    %783 = vadd.xlane.f32.xlu0 %v782
    %v784 = vpop.xlane.xlu0 %783
    %v785 = vsel %vm52, %v781, 0.0
    %786 = vadd.xlane.f32.xlu0 %v785
    %v787 = vpop.xlane.xlu0 %786
    %v788 = vmul.f32 %v784, %v65
    %v789 = vmul.f32 %v787, %v65
    %v790 = vadd.f32 %v788, 1e-05
    %v791 = vadd.f32 %v789, 1e-05
    %v792 = vrsqrt.pop %v790
    %v793 = vmul.f32 %v792, %v790
    %v794 = vmul.f32 %v793, %v792
    %v795 = vmul.f32 0.5, %v794
    %v796 = vsub.f32 1.5, %v795
    %v797 = vmul.f32 %v792, %v796
    %vm798 = vweird.f32 %v790
    %vm799 = vweird.f32 %v792
    %vm800 = vmor %vm798, %vm799
    %v801 = vsel %vm800, %v792, %v797
    %v802 = vrsqrt.pop %v791
    %v803 = vmul.f32 %v802, %v791
    %v804 = vmul.f32 %v803, %v802
    %v805 = vmul.f32 0.5, %v804
    %v806 = vsub.f32 1.5, %v805
    %v807 = vmul.f32 %v802, %v806
    %vm808 = vweird.f32 %v791
    %vm809 = vweird.f32 %v802
    %vm810 = vmor %vm808, %vm809
    %v811 = vsel %vm810, %v802, %v807
    %v812 = vmul.f32 %v778, %v801
    %v813 = vmul.f32 %v779, %v811
    %v815 = vperm.slane %v768, 0
    %v817 = vmul.f32 %v812, %v815
    %v818 = vmul.f32 %v813, %v815
    %v820 = vperm.slane %v769, 0
    %v822 = vadd.f32 %v817, %v820
    %v823 = vadd.f32 %v818, %v820
    %v824 = vld [vmem:[%s8] sm:$0xff]
    %v825 = vld [vmem:[%s8 + $0x8] sm:$0xff]
    %v826 = vld [vmem:[%s8 + $0x10] sm:$0xff]
    %v827 = vld [vmem:[%s8 + $0x18] sm:$0xff]
    %v828 = vld [vmem:[%s9] sm:$0x1]
    %v830 = vperm.slane %v828, 0
    %v833 = vsel %vm52, %v822, 0
    %v836 = vsel %vm52, %v823, 0
    %838 = vmatpush.msra.mxu0 0.0
    %839 = vmatpush.msra.mxu0 0.0
    %840 = vmatpush.msra.mxu0 0.0
    %841 = vmatpush.msra.mxu0 0.0
    %842 = vmatpush.msra.mxu0 0.0
    %843 = vmatpush.msra.mxu0 0.0
    %844 = vmatpush.msra.mxu0 0.0
    %845 = vmatpush.msra.mxu0 0.0
    %846 = vmatpush.msra.mxu0 0.0
    %847 = vmatpush.msra.mxu0 0.0
    %848 = vmatpush.msra.mxu0 0.0
    %849 = vmatpush.msra.mxu0 0.0
    %850 = vmatpush.msra.mxu0 %v827
    %851 = vmatpush.msra.mxu0 %v826
    %852 = vmatpush.msra.mxu0 %v825
    %853 = vmatpush.msra.mxu0 %v824
    %854 = vmatmul.f32.gmra.mxu0 %v833
    %v855 = vpop.f32.mrf.mxu0
    %v856 = vadd.f32 %v830, %v855
    %857 = vmatmul.f32.gmra.mxu0 %v836
    %v858 = vpop.f32.mrf.mxu0
    %v859 = vadd.f32 %v830, %v858
    %860 = vdwg.mxu0
    %v861 = vld [vmem:[%s10] sm:$0x1]
    %v862 = vld [vmem:[%s11] sm:$0x1]
    %863 = vadd.xlane.f32.xlu0 %v856
    %v864 = vpop.xlane.xlu0 %863
    %865 = vadd.xlane.f32.xlu0 %v859
    %v866 = vpop.xlane.xlu0 %865
    %v867 = vrcp.pop 128.0
    %v868 = vmul.f32 128.0, %v867
    %v869 = vsub.f32 1.0, %v868
    %v870 = vmul.f32 %v867, %v869
    %v871 = vadd.f32 %v867, %v870
    %vm872 = vweird.f32 %v867
    %v873 = vsel %vm872, %v867, %v871
    %v874 = vmul.f32 %v864, %v873
    %v875 = vmul.f32 %v866, %v873
    %v876 = vsub.f32 %v856, %v874
    %v877 = vsub.f32 %v859, %v875
    %v878 = vmul.f32 %v876, %v876
    %v879 = vmul.f32 %v877, %v877
    %880 = vadd.xlane.f32.xlu0 %v878
    %v881 = vpop.xlane.xlu0 %880
    %882 = vadd.xlane.f32.xlu0 %v879
    %v883 = vpop.xlane.xlu0 %882
    %v884 = vmul.f32 %v881, %v873
    %v885 = vmul.f32 %v883, %v873
    %v886 = vadd.f32 %v884, 1e-05
    %v887 = vadd.f32 %v885, 1e-05
    %v888 = vrsqrt.pop %v886
    %v889 = vmul.f32 %v888, %v886
    %v890 = vmul.f32 %v889, %v888
    %v891 = vmul.f32 0.5, %v890
    %v892 = vsub.f32 1.5, %v891
    %v893 = vmul.f32 %v888, %v892
    %vm894 = vweird.f32 %v886
    %vm895 = vweird.f32 %v888
    %vm896 = vmor %vm894, %vm895
    %v897 = vsel %vm896, %v888, %v893
    %v898 = vrsqrt.pop %v887
    %v899 = vmul.f32 %v898, %v887
    %v900 = vmul.f32 %v899, %v898
    %v901 = vmul.f32 0.5, %v900
    %v902 = vsub.f32 1.5, %v901
    %v903 = vmul.f32 %v898, %v902
    %vm904 = vweird.f32 %v887
    %vm905 = vweird.f32 %v898
    %vm906 = vmor %vm904, %vm905
    %v907 = vsel %vm906, %v898, %v903
    %v908 = vmul.f32 %v876, %v897
    %v909 = vmul.f32 %v877, %v907
    %v911 = vperm.slane %v861, 0
    %v913 = vmul.f32 %v908, %v911
    %v914 = vmul.f32 %v909, %v911
    %v916 = vperm.slane %v862, 0
    %v918 = vadd.f32 %v913, %v916
    %v919 = vadd.f32 %v914, %v916
    %v920 = vmax.f32 %v918, 0.0
    %v921 = vmax.f32 %v919, 0.0
    %v922 = vld [vmem:[%s12] sm:$0xff]
    %v923 = vld [vmem:[%s12 + $0x8] sm:$0xff]
    %v924 = vld [vmem:[%s12 + $0x10] sm:$0xff]
    %v925 = vld [vmem:[%s12 + $0x18] sm:$0xff]
    %v926 = vld [vmem:[%s12 + $0x20] sm:$0xff]
    %v927 = vld [vmem:[%s12 + $0x28] sm:$0xff]
    %v928 = vld [vmem:[%s12 + $0x30] sm:$0xff]
    %v929 = vld [vmem:[%s12 + $0x38] sm:$0xff]
    %v930 = vld [vmem:[%s12 + $0x40] sm:$0xff]
    %v931 = vld [vmem:[%s12 + $0x48] sm:$0xff]
    %v932 = vld [vmem:[%s12 + $0x50] sm:$0xff]
    %v933 = vld [vmem:[%s12 + $0x58] sm:$0xff]
    %v934 = vld [vmem:[%s12 + $0x60] sm:$0xff]
    %v935 = vld [vmem:[%s12 + $0x68] sm:$0xff]
    %v936 = vld [vmem:[%s12 + $0x70] sm:$0xff]
    %v937 = vld [vmem:[%s12 + $0x78] sm:$0xff]
    %v938 = vld [vmem:[%s13] sm:$0x1]
    %v940 = vperm.slane %v938, 0
    %942 = vmatpush.msra.mxu0 %v937
    %943 = vmatpush.msra.mxu0 %v936
    %944 = vmatpush.msra.mxu0 %v935
    %945 = vmatpush.msra.mxu0 %v934
    %946 = vmatpush.msra.mxu0 %v933
    %947 = vmatpush.msra.mxu0 %v932
    %948 = vmatpush.msra.mxu0 %v931
    %949 = vmatpush.msra.mxu0 %v930
    %950 = vmatpush.msra.mxu0 %v929
    %951 = vmatpush.msra.mxu0 %v928
    %952 = vmatpush.msra.mxu0 %v927
    %953 = vmatpush.msra.mxu0 %v926
    %954 = vmatpush.msra.mxu0 %v925
    %955 = vmatpush.msra.mxu0 %v924
    %956 = vmatpush.msra.mxu0 %v923
    %957 = vmatpush.msra.mxu0 %v922
    %958 = vmatmul.f32.gmra.mxu0 %v920
    %v959 = vpop.f32.mrf.mxu0
    %v960 = vadd.f32 %v940, %v959
    %961 = vmatmul.f32.gmra.mxu0 %v921
    %v962 = vpop.f32.mrf.mxu0
    %v963 = vadd.f32 %v940, %v962
    %964 = vdwg.mxu0
    %v965 = vadd.f32 %v766, %v960
    %v966 = vadd.f32 %v767, %v963
    %967 = vst.msk [vmem:[#allocation2] sm:$0xff] %vm52, %v965
    %968 = vst.msk [vmem:[#allocation2 + $0x8] sm:$0xff] %vm52, %v966
    // Predicated region
    $region58: #{tpu_custom_call.1} parent=1 // pred_check
      _
    $region59: #{tpu_custom_call.1} parent=1 // pred_check_branch
      %970 = sbr.rel (0) target = $region61
    $region60: #{tpu_custom_call.1} parent=1 // pred_region
      %972 = vsyncadd [#allocation3], 0
      %s973 = sshll.u32 [#allocation2], 4
      %s974 = int_to_ptr.vmem [resolvable:$true] %s973
      %s975 = sshll.u32 %s14, 4
      %s976 = int_to_ptr.hbm [resolvable:$true] %s975
      %981 = dma.vmem_to_hbm [thread:$0]  %s974, 256, %s976, [#allocation3], 128, 128, 8
    $region61: #{tpu_custom_call.1} parent=1 // pred_fallthru
      _
    // Predicated region
    $region62: #{tpu_custom_call.1} parent=1 // pred_check
      _
    $region63: #{tpu_custom_call.1} parent=1 // pred_check_branch
      %983 = sbr.rel (0) target = $region65
    $region64: #{tpu_custom_call.1} parent=1 // pred_region
      %985 = dma.done [#allocation3], 256
    $region65: #{tpu_custom_call.1} parent=1 // pred_fallthru
      _
    %986 = vsyncpa [#allocation3], 1

</llo_original>
